<compile_context>
chip_gen: v5e
topology: v5e:2x2
jax: 0.10.0
libtpu: 0.0.40
codegen_flags: <defaults>
</compile_context>

<pallas_src>
import jax
import jax.numpy as jnp
from jax import lax
from jax.experimental import pallas as pl
from jax.experimental.pallas import tpu as pltpu


def _round_up(x, m):
    return ((x + m - 1) // m) * m


# ---------------------------------------------------------------------------
# Tiled linear kernel: y = x @ w + b   (bf16 MXU inputs, f32 accumulation)
# ---------------------------------------------------------------------------
def _linear_kernel(x_ref, w_ref, b_ref, o_ref, acc_ref):
    k = pl.program_id(2)

    @pl.when(k == 0)
    def _():
        acc_ref[...] = jnp.zeros_like(acc_ref)

    acc_ref[...] += jnp.dot(x_ref[...], w_ref[...],
                            preferred_element_type=jnp.float32)

    @pl.when(k == pl.num_programs(2) - 1)
    def _():
        o_ref[...] = (acc_ref[...] + b_ref[...]).astype(o_ref.dtype)


def pallas_linear(x2d, w, b, *, tm_pref=256, tn_pref=256, tk_pref=256):
    """x2d: (N, Din), w: (Dout, Din) (PyTorch layout), b: (Dout,) -> (N, Dout) f32."""
    n, din = x2d.shape
    dout = w.shape[0]

    # Pick tile sizes <= prefs that divide the (zero-)padded dims; pads are
    # sliced off the result. Zero padding keeps the matmul exact.
    mp = _round_up(n, 8)
    tm = min(tm_pref, mp)
    mp = _round_up(mp, tm)

    kp = _round_up(din, 128)
    tk = min(tk_pref, kp)
    kp = _round_up(kp, tk)

    np_ = _round_up(dout, 128)
    tn = min(tn_pref, np_)
    np_ = _round_up(np_, tn)

    xb = jnp.pad(x2d, ((0, mp - n), (0, kp - din))).astype(jnp.bfloat16)
    wb = jnp.pad(w.T, ((0, kp - din), (0, np_ - dout))).astype(jnp.bfloat16)
    bb = jnp.pad(b.astype(jnp.float32), (0, np_ - dout)).reshape(1, np_)

    grid = (mp // tm, np_ // tn, kp // tk)
    out = pl.pallas_call(
        _linear_kernel,
        out_shape=jax.ShapeDtypeStruct((mp, np_), jnp.float32),
        grid=grid,
        in_specs=[
            pl.BlockSpec((tm, tk), lambda i, j, k: (i, k)),
            pl.BlockSpec((tk, tn), lambda i, j, k: (k, j)),
            pl.BlockSpec((1, tn), lambda i, j, k: (0, j)),
        ],
        out_specs=pl.BlockSpec((tm, tn), lambda i, j, k: (i, j)),
        scratch_shapes=[pltpu.VMEM((tm, tn), jnp.float32)],
        compiler_params=pltpu.CompilerParams(
            dimension_semantics=("parallel", "parallel", "arbitrary"),
            vmem_limit_bytes=64 * 1024 * 1024,
        ),
    )(xb, wb, bb)
    return out[:n, :dout]


# ---------------------------------------------------------------------------
# Flash-style attention: online softmax over KV tiles, all heads per block
# ---------------------------------------------------------------------------
def _make_flash_attn_kernel(scale):
    def _flash_attn_kernel(q_ref, k_ref, v_ref, o_ref, m_sc, l_sc, acc_sc):
        ki = pl.program_id(2)

        @pl.when(ki == 0)
        def _():
            m_sc[...] = jnp.full_like(m_sc, -jnp.inf)
            l_sc[...] = jnp.zeros_like(l_sc)
            acc_sc[...] = jnp.zeros_like(acc_sc)

        # Apply 1/sqrt(hd) to the (small) q tile in-kernel: H*tq*hd VPU muls
        # instead of H*tq*tkv on the scores, and no extra wrapper-side pass.
        q = q_ref[0] * scale   # (H, tq, hd)  bf16
        k = k_ref[0]           # (H, tkv, hd) bf16
        v = v_ref[0]           # (H, tkv, hd) bf16

        # s[h,q,k] = sum_d q[h,q,d] * k[h,k,d] — contraction on hd, batched on H.
        s = lax.dot_general(q, k,
                            dimension_numbers=(((2,), (2,)), ((0,), (0,))),
                            preferred_element_type=jnp.float32)   # (H, tq, tkv)

        m_prev = m_sc[...]
        m_new = jnp.maximum(m_prev, jnp.max(s, axis=-1, keepdims=True))
        alpha = jnp.exp(m_prev - m_new)
        p = jnp.exp(s - m_new)
        l_sc[...] = alpha * l_sc[...] + jnp.sum(p, axis=-1, keepdims=True)
        pv = lax.dot_general(p.astype(v.dtype), v,
                             dimension_numbers=(((2,), (1,)), ((0,), (0,))),
                             preferred_element_type=jnp.float32)  # (H, tq, hd)
        acc_sc[...] = alpha * acc_sc[...] + pv
        m_sc[...] = m_new

        @pl.when(ki == pl.num_programs(2) - 1)
        def _():
            inv = pl.reciprocal(l_sc[...], approx=True)
            o_ref[0] = (acc_sc[...] * inv).astype(o_ref.dtype)

    return _flash_attn_kernel


def _pick_seq_tile(t):
    if t <= 128:
        return t
    return 128 if t % 128 == 0 else t


def pallas_attention(q, k, v):
    """q: (B,H,Tq,hd), k/v: (B,H,Tkv,hd) f32 -> (B,H,Tq,hd) bf16 = softmax(qk^T/sqrt(hd)) v."""
    B, H, Tq, hd = q.shape
    Tkv = k.shape[2]
    scale = 1.0 / float(hd) ** 0.5

    qb = q.astype(jnp.bfloat16)
    kb = k.astype(jnp.bfloat16)
    vb = v.astype(jnp.bfloat16)

    tq = _pick_seq_tile(Tq)
    tkv = _pick_seq_tile(Tkv)
    grid = (B, Tq // tq, Tkv // tkv)

    q_spec = pl.BlockSpec((1, H, tq, hd), lambda b, qi, ki: (b, 0, qi, 0))
    kv_spec = pl.BlockSpec((1, H, tkv, hd), lambda b, qi, ki: (b, 0, ki, 0))
    o_spec = pl.BlockSpec((1, H, tq, hd), lambda b, qi, ki: (b, 0, qi, 0))

    # TODO(synk): for real incremental decode, scalar-prefetch the live cache
    # length into SMEM (PrefetchScalarGridSpec) and bound the KV grid axis to
    # the valid prefix instead of attending over the whole cached buffer.
    # TODO(synk): when hd < 128, a lane-dense (tq, H*hd) output layout would
    # avoid masked partial stores; kept head-major here for lowering safety.
    return pl.pallas_call(
        _make_flash_attn_kernel(scale),
        out_shape=jax.ShapeDtypeStruct((B, H, Tq, hd), jnp.bfloat16),
        grid=grid,
        in_specs=[q_spec, kv_spec, kv_spec],
        out_specs=o_spec,
        scratch_shapes=[
            pltpu.VMEM((H, tq, 1), jnp.float32),   # running max m
            pltpu.VMEM((H, tq, 1), jnp.float32),   # running denom l
            pltpu.VMEM((H, tq, hd), jnp.float32),  # output accumulator
        ],
        compiler_params=pltpu.CompilerParams(
            dimension_semantics=("parallel", "parallel", "arbitrary"),
            vmem_limit_bytes=64 * 1024 * 1024,
        ),
    )(qb, kb, vb)


# ---------------------------------------------------------------------------
# Module equivalent
# ---------------------------------------------------------------------------
class KVCacheAttentionPallas:
    def __init__(self, d_model, n_heads, key):
        assert d_model % n_heads == 0, "d_model must be divisible by n_heads"
        self.d_model = d_model
        self.n_heads = n_heads
        self.head_dim = d_model // n_heads
        self.kv_cache = {}   # host-side Python dict, mirrors KeyValueCache
        ks = jax.random.split(key, 8)
        init = lambda k, shape: jax.random.normal(k, shape, jnp.float32) * 0.02
        # PyTorch nn.Linear weight layout: (out_features, in_features)
        self.q_w, self.q_b = init(ks[0], (d_model, d_model)), init(ks[1], (d_model,))
        self.k_w, self.k_b = init(ks[2], (d_model, d_model)), init(ks[3], (d_model,))
        self.v_w, self.v_b = init(ks[4], (d_model, d_model)), init(ks[5], (d_model,))
        self.o_w, self.o_b = init(ks[6], (d_model, d_model)), init(ks[7], (d_model,))
        # Fused QKV weights: one projection kernel -> x is read from HBM once.
        self.qkv_w = jnp.concatenate([self.q_w, self.k_w, self.v_w], axis=0)  # (3C, C)
        self.qkv_b = jnp.concatenate([self.q_b, self.k_b, self.v_b], axis=0)  # (3C,)

    def _split_heads(self, y2d, B, T):
        # (B*T, C) -> (B, H, T, hd)
        return y2d.reshape(B, T, self.n_heads, self.head_dim).transpose(0, 2, 1, 3)

    def __call__(self, x, layer_id):
        B, T, C = x.shape
        x2d = x.reshape(B * T, C)

        k_cache = self.kv_cache.get((layer_id, "k"))
        v_cache = self.kv_cache.get((layer_id, "v"))
        if k_cache is None or v_cache is None:
            qkv = pallas_linear(x2d, self.qkv_w, self.qkv_b)        # (B*T, 3C)
            q = self._split_heads(qkv[:, :C], B, T)
            k = self._split_heads(qkv[:, C:2 * C], B, T)
            v = self._split_heads(qkv[:, 2 * C:], B, T)
            self.kv_cache[(layer_id, "k")] = k
            self.kv_cache[(layer_id, "v")] = v
        else:
            # Cache hit: only the query projection is needed.
            q = self._split_heads(pallas_linear(x2d, self.q_w, self.q_b), B, T)
            k, v = k_cache, v_cache

        attn = pallas_attention(q, k, v)                            # (B,H,Tq,hd) bf16
        attn2d = attn.transpose(0, 2, 1, 3).reshape(B * T, C)
        out = pallas_linear(attn2d, self.o_w, self.o_b)
        return out.reshape(B, T, C)


# ---------------------------------------------------------------------------
# Reference (plain JAX, f32) for verification
# ---------------------------------------------------------------------------
def reference_forward(mod, x):
    B, T, C = x.shape
    H, hd = mod.n_heads, mod.head_dim
    lin = lambda z, w, b: z @ w.T + b
    q = lin(x, mod.q_w, mod.q_b).reshape(B, T, H, hd).transpose(0, 2, 1, 3)
    k = lin(x, mod.k_w, mod.k_b).reshape(B, T, H, hd).transpose(0, 2, 1, 3)
    v = lin(x, mod.v_w, mod.v_b).reshape(B, T, H, hd).transpose(0, 2, 1, 3)
    s = jnp.einsum("bhqd,bhkd->bhqk", q, k) * (hd ** -0.5)
    p = jax.nn.softmax(s, axis=-1)
    o = jnp.einsum("bhqk,bhkd->bhqd", p, v)
    o = o.transpose(0, 2, 1, 3).reshape(B, T, C)
    return lin(o, mod.o_w, mod.o_b)


if __name__ == "__main__":
    key = jax.random.PRNGKey(0)
    k_params, k_x = jax.random.split(key)

    B, T, d_model, n_heads = 2, 8, 32, 4
    mod = KVCacheAttentionPallas(d_model, n_heads, k_params)
    x = jax.random.normal(k_x, (B, T, d_model), jnp.float32)

    out1 = mod(x, layer_id=0)       # cache miss: fused QKV projection path
    jax.block_until_ready(out1)
    out2 = mod(x, layer_id=0)       # cache hit: q projection + cached k/v
    jax.block_until_ready(out2)

    ref = reference_forward(mod, x)

    def max_rel_err(a, b):
        return float(jnp.max(jnp.abs(a - b)) / jnp.maximum(jnp.max(jnp.abs(b)), 1e-6))

    # bf16 MXU inputs + approx reciprocal => compare with a relative bound.
    assert max_rel_err(out1, ref) < 0.05, f"cache-miss path err {max_rel_err(out1, ref)}"
    assert max_rel_err(out2, ref) < 0.05, f"cache-hit path err {max_rel_err(out2, ref)}"
    print("KERNEL_OK")
</pallas_src>

<mosaic_0001>
module attributes {stable_mosaic.version = 11 : i64} {
  func.func @_linear_kernel(%arg0: i32, %arg1: i32, %arg2: i32, %arg3: memref<16x128xbf16, #tpu.memory_space<vmem>>, %arg4: memref<128x128xbf16, #tpu.memory_space<vmem>>, %arg5: memref<1x128xf32, #tpu.memory_space<vmem>>, %arg6: memref<16x128xf32, #tpu.memory_space<vmem>>, %arg7: memref<16x128xf32, #tpu.memory_space<vmem>>) attributes {dimension_semantics = [#tpu.dimension_semantics<parallel>, #tpu.dimension_semantics<parallel>, #tpu.dimension_semantics<arbitrary>], iteration_bounds = array<i64: 1, 1, 1>, scalar_prefetch = 0 : i64, scratch_operands = 1 : i64, tpu.core_type = #tpu.core_type<tc>, window_params = [{transform_indices = @transform_0, window_bounds = array<i64: 16, 128>}, {transform_indices = @transform_1, window_bounds = array<i64: 128, 128>}, {transform_indices = @transform_2, window_bounds = array<i64: 1, 128>}, {transform_indices = @transform_3, window_bounds = array<i64: 16, 128>}]} {
    %c0_i32 = arith.constant 0 : i32
    %0 = arith.cmpi eq, %arg2, %c0_i32 : i32
    %1 = arith.extui %0 : i1 to i32
    %c0_i32_0 = arith.constant 0 : i32
    %2 = arith.cmpi ne, %1, %c0_i32_0 : i32
    scf.if %2 {
      %cst_10 = arith.constant 0.000000e+00 : f32
      %12 = vector.broadcast %cst_10 : f32 to vector<16x128xf32>
      %c0_11 = arith.constant 0 : index
      %c0_12 = arith.constant 0 : index
      %13 = vector.load %arg7[%c0_11, %c0_12] : memref<16x128xf32, #tpu.memory_space<vmem>>, vector<16x128xf32>
      tpu.vector_store %arg7[%c0_11, %c0_12], %12 {strides = array<i32>} : memref<16x128xf32, #tpu.memory_space<vmem>>, vector<16x128xf32>,
    } else {
    }
    %c0 = arith.constant 0 : index
    %c0_1 = arith.constant 0 : index
    %3 = vector.load %arg7[%c0, %c0_1] : memref<16x128xf32, #tpu.memory_space<vmem>>, vector<16x128xf32>
    %c0_2 = arith.constant 0 : index
    %c0_3 = arith.constant 0 : index
    %4 = vector.load %arg3[%c0_2, %c0_3] : memref<16x128xbf16, #tpu.memory_space<vmem>>, vector<16x128xbf16>
    %c0_4 = arith.constant 0 : index
    %c0_5 = arith.constant 0 : index
    %5 = vector.load %arg4[%c0_4, %c0_5] : memref<128x128xbf16, #tpu.memory_space<vmem>>, vector<128x128xbf16>
    %cst = arith.constant dense<0.000000e+00> : vector<16x128xf32>
    %6 = tpu.matmul %4, %5, %cst {dimension_numbers = #tpu.dot_dimension_numbers<[1], [0], [0], [1], [0, 0, 1, 1], [], []>} : vector<16x128xbf16>, vector<128x128xbf16>, vector<16x128xf32> -> vector<16x128xf32>
    %7 = arith.addf %3, %6 : vector<16x128xf32>
    %c0_6 = arith.constant 0 : index
    %c0_7 = arith.constant 0 : index
    %8 = vector.load %arg7[%c0_6, %c0_7] : memref<16x128xf32, #tpu.memory_space<vmem>>, vector<16x128xf32>
    tpu.vector_store %arg7[%c0_6, %c0_7], %7 {strides = array<i32>} : memref<16x128xf32, #tpu.memory_space<vmem>>, vector<16x128xf32>,
    %c0_i32_8 = arith.constant 0 : i32
    %9 = arith.cmpi eq, %arg2, %c0_i32_8 : i32
    %10 = arith.extui %9 : i1 to i32
    %c0_i32_9 = arith.constant 0 : i32
    %11 = arith.cmpi ne, %10, %c0_i32_9 : i32
    scf.if %11 {
      %c0_10 = arith.constant 0 : index
      %c0_11 = arith.constant 0 : index
      %12 = vector.load %arg7[%c0_10, %c0_11] : memref<16x128xf32, #tpu.memory_space<vmem>>, vector<16x128xf32>
      %c0_12 = arith.constant 0 : index
      %c0_13 = arith.constant 0 : index
      %13 = vector.load %arg5[%c0_12, %c0_13] : memref<1x128xf32, #tpu.memory_space<vmem>>, vector<1x128xf32>
      %14 = vector.broadcast %13 : vector<1x128xf32> to vector<16x128xf32>
      %15 = arith.addf %12, %14 : vector<16x128xf32>
      %c0_14 = arith.constant 0 : index
      %c0_15 = arith.constant 0 : index
      %16 = vector.load %arg6[%c0_14, %c0_15] : memref<16x128xf32, #tpu.memory_space<vmem>>, vector<16x128xf32>
      tpu.vector_store %arg6[%c0_14, %c0_15], %15 {strides = array<i32>} : memref<16x128xf32, #tpu.memory_space<vmem>>, vector<16x128xf32>,
    } else {
    }
    return
  }
  func.func @transform_0(%arg0: i32, %arg1: i32, %arg2: i32) -> (i32, i32) {
    %c0_i32 = arith.constant 0 : i32
    return %arg0, %arg2 : i32, i32
  }
  func.func @transform_1(%arg0: i32, %arg1: i32, %arg2: i32) -> (i32, i32) {
    %c0_i32 = arith.constant 0 : i32
    return %arg2, %arg1 : i32, i32
  }
  func.func @transform_2(%arg0: i32, %arg1: i32, %arg2: i32) -> (i32, i32) {
    %c0_i32 = arith.constant 0 : i32
    %c0_i32_0 = arith.constant 0 : i32
    return %c0_i32, %arg1 : i32, i32
  }
  func.func @transform_3(%arg0: i32, %arg1: i32, %arg2: i32) -> (i32, i32) {
    %c0_i32 = arith.constant 0 : i32
    return %arg0, %arg1 : i32, i32
  }
}

</mosaic_0001>

<llo_original>
// kernel: tpu_custom_call.1
$region0: #{tpu_custom_call.1}
  #allocation0 [shape = 'u32[]', space=smem, size = 0x4, offset = 0x4, fixed_abs, tag = 'smem constant byte address 0x4 - core index']
  #allocation1 [shape = 'u32[72,128]{1,0:T(1,128)}', space=vmem, size = 0x9000, scoped, tag = 'internal scratch']
  #allocation2 [shape = 'f32[16,128]{1,0:T(8,128)}', space=vmem, size = 0x2000, scoped, tag = 'scratch operand']
  %s0 = inlined_call_operand.hbm [shape: bf16[16,128], index: 0, kind: input, shape index: {}]
  %s1 = inlined_call_operand.hbm [shape: bf16[128,128], index: 1, kind: input, shape index: {}]
  %s2 = inlined_call_operand.vmem [shape: f32[1,128], index: 2, kind: input, shape index: {}]
  %s3 = inlined_call_operand.hbm [shape: f32[16,128], index: 3, kind: output, shape index: {}]
  %s4 = sld [smem:[#allocation0]]
  $region38: #{tpu_custom_call.1} parent=0
    _
  %s6 = ssub.s32 1, %s4
  %s7 = scalar_select 0, %s6, %s4
  $region1: #{tpu_custom_call.1} parent=0
    #allocation3 [shape = 'u8[4096]{0}', space=vmem, size = 0x1000, scoped, tag = 'input window, operand 0, single buffered']
    #allocation4 [shape = 's32[1]{0}', space=sflag, size = 0x4, scoped, tag = 'scoped memory for tpu_custom_call.1']
    #allocation5 [shape = 's32[1]{0}', space=sflag, size = 0x4, scoped, tag = 'scoped memory for tpu_custom_call.1']
    #allocation6 [shape = 'u8[32768]{0}', space=vmem, size = 0x8000, scoped, tag = 'input window, operand 1, single buffered']
    #allocation7 [shape = 's32[1]{0}', space=sflag, size = 0x4, scoped, tag = 'scoped memory for tpu_custom_call.1']
    #allocation8 [shape = 'u8[8192]{0}', space=vmem, size = 0x2000, scoped, tag = 'output window, operand 0, single buffered']
    %8 = vsyncpa [#allocation4], 0
    %9 = vsyncpa [#allocation7], 0
    %10 = vsyncpa [#allocation5], 0
    // Predicated region
    $region2: #{tpu_custom_call.1} parent=1 // pred_check
      _
    $region3: #{tpu_custom_call.1} parent=1 // pred_check_branch
      %12 = sbr.rel (0) target = $region5
    $region4: #{tpu_custom_call.1} parent=1 // pred_region
      %14 = vsyncadd [#allocation4], 0
      %s15 = sshll.u32 %s0, 4
      %s16 = int_to_ptr.hbm [resolvable:$true] %s15
      %s17 = sshll.u32 [#allocation3], 4
      %s18 = int_to_ptr.vmem [resolvable:$true] %s17
      %23 = dma.hbm_to_vmem [thread:$0]  %s16, 128, %s18, [#allocation4], 64, 64, 4
    $region5: #{tpu_custom_call.1} parent=1 // pred_fallthru
      _
    // Predicated region
    $region6: #{tpu_custom_call.1} parent=1 // pred_check
      _
    $region7: #{tpu_custom_call.1} parent=1 // pred_check_branch
      %25 = sbr.rel (0) target = $region9
    $region8: #{tpu_custom_call.1} parent=1 // pred_region
      %27 = vsyncadd [#allocation7], 0
      %s28 = sshll.u32 %s1, 4
      %s29 = int_to_ptr.hbm [resolvable:$true] %s28
      %s30 = sshll.u32 [#allocation6], 4
      %s31 = int_to_ptr.vmem [resolvable:$true] %s30
      %36 = dma.hbm_to_vmem [thread:$0]  %s29, 1024, %s31, [#allocation7], 64, 64, 4
    $region9: #{tpu_custom_call.1} parent=1 // pred_fallthru
      _
    // Predicated region
    $region10: #{tpu_custom_call.1} parent=1 // pred_check
      _
    $region11: #{tpu_custom_call.1} parent=1 // pred_check_branch
      %38 = sbr.rel (0) target = $region13
    $region12: #{tpu_custom_call.1} parent=1 // pred_region
      _
    $region13: #{tpu_custom_call.1} parent=1 // pred_fallthru
      _
    // Predicated region
    $region14: #{tpu_custom_call.1} parent=1 // pred_check
      _
    $region15: #{tpu_custom_call.1} parent=1 // pred_check_branch
      %40 = sbr.rel (0) target = $region17
    $region16: #{tpu_custom_call.1} parent=1 // pred_region
      %42 = dma.done [#allocation4], 128
    $region17: #{tpu_custom_call.1} parent=1 // pred_fallthru
      _
    // Predicated region
    $region18: #{tpu_custom_call.1} parent=1 // pred_check
      _
    $region19: #{tpu_custom_call.1} parent=1 // pred_check_branch
      %44 = sbr.rel (0) target = $region21
    $region20: #{tpu_custom_call.1} parent=1 // pred_region
      %46 = dma.done [#allocation7], 1024
    $region21: #{tpu_custom_call.1} parent=1 // pred_fallthru
      _
    %p47 = scmp.eq.s32.totalorder 0, 0
    // Predicated region
    $region22: #{tpu_custom_call.1} parent=1 // pred_check
      %p48 = pneg %p47
    $region23: #{tpu_custom_call.1} parent=1 // pred_check_branch
      %50 = sbr.rel (%p48) target = $region25
    $region24: #{tpu_custom_call.1} parent=1 // pred_region
      %51 = vst [vmem:[#allocation2] sm:$0xff] 0.0
      %52 = vst [vmem:[#allocation2 + $0x8] sm:$0xff] 0.0
    $region25: #{tpu_custom_call.1} parent=1 // pred_fallthru
      _
    %v53 = vld [vmem:[#allocation2] sm:$0xff]
    %v54 = vld [vmem:[#allocation2 + $0x8] sm:$0xff]
    %v55 = vld [vmem:[#allocation3] sm:$0xf]
    %v56 = vld [vmem:[#allocation3 + $0x4] sm:$0xf]
    %v57 = vld [vmem:[#allocation6] sm:$0xf]
    %v58 = vld [vmem:[#allocation6 + $0x4] sm:$0xf]
    %v59 = vld [vmem:[#allocation6 + $0x8] sm:$0xf]
    %v60 = vld [vmem:[#allocation6 + $0xc] sm:$0xf]
    %v61 = vld [vmem:[#allocation6 + $0x10] sm:$0xf]
    %v62 = vld [vmem:[#allocation6 + $0x14] sm:$0xf]
    %v63 = vld [vmem:[#allocation6 + $0x18] sm:$0xf]
    %v64 = vld [vmem:[#allocation6 + $0x1c] sm:$0xf]
    %v65 = vld [vmem:[#allocation6 + $0x20] sm:$0xf]
    %v66 = vld [vmem:[#allocation6 + $0x24] sm:$0xf]
    %v67 = vld [vmem:[#allocation6 + $0x28] sm:$0xf]
    %v68 = vld [vmem:[#allocation6 + $0x2c] sm:$0xf]
    %v69 = vld [vmem:[#allocation6 + $0x30] sm:$0xf]
    %v70 = vld [vmem:[#allocation6 + $0x34] sm:$0xf]
    %v71 = vld [vmem:[#allocation6 + $0x38] sm:$0xf]
    %v72 = vld [vmem:[#allocation6 + $0x3c] sm:$0xf]
    %v75 = vunpack.c.l.b16 %v55
    %v76 = vunpack.c.l.b16 %v56
    %v77 = vpack.c.b16 %v76, %v75
    %v95 = vunpack.c.l.b16 %v57
    %v96 = vunpack.c.l.b16 %v58
    %v97 = vunpack.c.l.b16 %v59
    %v98 = vunpack.c.l.b16 %v60
    %v99 = vunpack.c.l.b16 %v61
    %v100 = vunpack.c.l.b16 %v62
    %v101 = vunpack.c.l.b16 %v63
    %v102 = vunpack.c.l.b16 %v64
    %v103 = vunpack.c.l.b16 %v65
    %v104 = vunpack.c.l.b16 %v66
    %v105 = vunpack.c.l.b16 %v67
    %v106 = vunpack.c.l.b16 %v68
    %v107 = vunpack.c.l.b16 %v69
    %v108 = vunpack.c.l.b16 %v70
    %v109 = vunpack.c.l.b16 %v71
    %v110 = vunpack.c.l.b16 %v72
    %v111 = vpack.c.b16 %v96, %v95
    %v112 = vpack.c.b16 %v98, %v97
    %v113 = vpack.c.b16 %v100, %v99
    %v114 = vpack.c.b16 %v102, %v101
    %v115 = vpack.c.b16 %v104, %v103
    %v116 = vpack.c.b16 %v106, %v105
    %v117 = vpack.c.b16 %v108, %v107
    %v118 = vpack.c.b16 %v110, %v109
    %127 = vmatpush.bf16.msra.mxu0 %v118
    %128 = vmatpush.bf16.msra.mxu0 %v117
    %129 = vmatpush.bf16.msra.mxu0 %v116
    %130 = vmatpush.bf16.msra.mxu0 %v115
    %131 = vmatpush.bf16.msra.mxu0 %v114
    %132 = vmatpush.bf16.msra.mxu0 %v113
    %133 = vmatpush.bf16.msra.mxu0 %v112
    %134 = vmatpush.bf16.msra.mxu0 %v111
    %135 = vmatmul.bf16.gmra.mxu0 %v77
    %v136 = vpop.f32.mrf.mxu0
    %v137 = vadd.f32 0.0, %v136
    %v138 = vpop.f32.mrf.mxu0
    %v139 = vadd.f32 0.0, %v138
    %140 = vdwg.mxu0
    %v141 = vadd.f32 %v53, %v137
    %v142 = vadd.f32 %v54, %v139
    %143 = vst [vmem:[#allocation2] sm:$0xff] %v141
    %144 = vst [vmem:[#allocation2 + $0x8] sm:$0xff] %v142
    // Predicated region
    $region26: #{tpu_custom_call.1} parent=1 // pred_check
      %p145 = pneg %p47
    $region27: #{tpu_custom_call.1} parent=1 // pred_check_branch
      %147 = sbr.rel (%p145) target = $region29
    $region28: #{tpu_custom_call.1} parent=1 // pred_region
      %v148 = vld [vmem:[#allocation2] sm:$0xff]
      %v149 = vld [vmem:[#allocation2 + $0x8] sm:$0xff]
      %v150 = vld [vmem:[%s2] sm:$0x1]
      %v152 = vperm.slane %v150, 0
      %v154 = vadd.f32 %v148, %v152
      %v155 = vadd.f32 %v149, %v152
      %156 = vst [vmem:[#allocation8] sm:$0xff] %v154
      %157 = vst [vmem:[#allocation8 + $0x8] sm:$0xff] %v155
    $region29: #{tpu_custom_call.1} parent=1 // pred_fallthru
      _
    // Predicated region
    $region30: #{tpu_custom_call.1} parent=1 // pred_check
      _
    $region31: #{tpu_custom_call.1} parent=1 // pred_check_branch
      %159 = sbr.rel (0) target = $region33
    $region32: #{tpu_custom_call.1} parent=1 // pred_region
      %161 = vsyncadd [#allocation5], 0
      %s162 = sshll.u32 [#allocation8], 4
      %s163 = int_to_ptr.vmem [resolvable:$true] %s162
      %s164 = sshll.u32 %s3, 4
      %s165 = int_to_ptr.hbm [resolvable:$true] %s164
      %170 = dma.vmem_to_hbm [thread:$0]  %s163, 256, %s165, [#allocation5], 128, 128, 8
    $region33: #{tpu_custom_call.1} parent=1 // pred_fallthru
      _
    // Predicated region
    $region34: #{tpu_custom_call.1} parent=1 // pred_check
      _
    $region35: #{tpu_custom_call.1} parent=1 // pred_check_branch
      %172 = sbr.rel (0) target = $region37
    $region36: #{tpu_custom_call.1} parent=1 // pred_region
      %174 = dma.done [#allocation5], 256
    $region37: #{tpu_custom_call.1} parent=1 // pred_fallthru
      _
    %175 = vsyncpa [#allocation4], 1
    %176 = vsyncpa [#allocation7], 1
    %177 = vsyncpa [#allocation5], 1

</llo_original>
